<compile_context>
chip_gen: v7x
topology: tpu7x:2x2x1
jax: 0.10.0
libtpu: 0.0.40
codegen_flags: <defaults>
</compile_context>

<pallas_src>
import functools

import jax
import jax.numpy as jnp
from jax import lax
from jax.experimental import pallas as pl
from jax.experimental.pallas import tpu as pltpu


def _round_up(x, m):
    return (x + m - 1) // m * m


# ---------------------------------------------------------------------------
# Path 1: VMEM-resident table, one-hot MXU gather, large lane-dense token tiles.
# ---------------------------------------------------------------------------
def _bigram_vmem_kernel(tok_ref, w_ref, out_ref):
    """One grid step: out[(TM, V)] = table[tok_tile] via a one-hot MXU contraction.

    tok_ref: (TM, 1) int32 token ids for this tile (VMEM).
    w_ref:   (V, V) table, resident in VMEM across the whole grid (fetched once).
    out_ref: (TM, V) output logits tile (lane-dense store).
    """
    tm, v = out_ref.shape
    ids = tok_ref[...]                                   # (TM, 1) int32
    col = lax.broadcasted_iota(jnp.int32, (tm, v), 1)    # (TM, V) lane iota
    onehot = col == ids                                  # bool, lane-broadcast compare
    w = w_ref[...]
    if w.dtype == jnp.float32:
        # Split-f32 gather: w_hi is exactly bf16-representable, so onehot @ w_hi is
        # exact even under a single bf16 MXU pass; the residual w_lo (<= 2^-9 |w|)
        # contributes at most ~2^-18 |w| of error.  Keeps the lookup numerically
        # equal to weights[context] without relying on a particular f32 matmul
        # precision mode.
        oh = onehot.astype(jnp.float32)
        w_hi = w.astype(jnp.bfloat16).astype(jnp.float32)
        w_lo = w - w_hi
        out = (jnp.dot(oh, w_hi, preferred_element_type=jnp.float32)
               + jnp.dot(oh, w_lo, preferred_element_type=jnp.float32))
    else:
        # bf16 (or other) tables: one-hot and table rows are exact in one pass.
        out = jnp.dot(onehot.astype(w.dtype), w, preferred_element_type=jnp.float32)
    out_ref[...] = out.astype(out_ref.dtype)


def _bigram_logits_vmem(tok, weights, tokens_per_step):
    n = tok.shape[0]
    V = weights.shape[0]
    w_bytes = weights.dtype.itemsize

    # Token-tile size: multiple of 8 (f32 sublane tile), capped by the actual
    # token count so tiny demo shapes don't gather hundreds of padded rows.
    TM = min(_round_up(tokens_per_step, 8), _round_up(n, 8))
    n_pad = _round_up(n, TM)
    tok2d = jnp.pad(tok, (0, n_pad - n)).reshape(n_pad, 1)
    num_steps = n_pad // TM

    # VMEM working set: ids (x2 buffers) + resident table (x2) + output tiles (x2)
    # + one-hot temporaries.  Only raise the scoped limit when needed and keep it
    # under v7x's 64 MiB physical VMEM.
    est = (2 * TM * 4) + (2 * V * V * w_bytes) + (2 * TM * V * 4) + (TM * V * 4) + (2 << 20)
    vmem_limit = None
    if est > (30 << 20):
        vmem_limit = min(max(est + (4 << 20), 32 << 20), 56 << 20)

    out = pl.pallas_call(
        _bigram_vmem_kernel,
        out_shape=jax.ShapeDtypeStruct((n_pad, V), weights.dtype),
        grid=(num_steps,),
        in_specs=[
            pl.BlockSpec((TM, 1), lambda i: (i, 0)),   # token ids tile
            pl.BlockSpec((V, V), lambda i: (0, 0)),    # single table operand, resident
        ],
        out_specs=pl.BlockSpec((TM, V), lambda i: (i, 0)),
        compiler_params=pltpu.CompilerParams(
            dimension_semantics=("parallel",),
            vmem_limit_bytes=vmem_limit,
        ),
    )(tok2d, weights)
    return out[:n]


# ---------------------------------------------------------------------------
# Path 2: large vocab — HBM->HBM DMA row-gather ring (no VMEM round trip).
# ---------------------------------------------------------------------------
def _bigram_hbm_gather_kernel(tok_ref, w_hbm, out_hbm, copy_sem, *,
                              rows_per_step, ring):
    """One grid step: DMA `rows_per_step` gathered table rows HBM->HBM.

    tok_ref:  (n_pad,) int32 token ids in SMEM (scalar prefetch).
    w_hbm:    (V, V) table, left in HBM (memory_space=pl.ANY).
    out_hbm:  (n_pad, V) output, left in HBM (memory_space=pl.ANY).
    copy_sem: (ring,) DMA semaphores -- `ring` row copies kept in flight.
    """
    base = pl.program_id(0) * rows_per_step

    def row_copy(r):
        row = base + r
        t = tok_ref[row]
        return pltpu.make_async_copy(
            w_hbm.at[pl.ds(t, 1), :],          # gathered table row  (1, V)
            out_hbm.at[pl.ds(row, 1), :],      # output row          (1, V)
            copy_sem.at[r % ring],
        )

    # Prime the ring.
    @pl.loop(0, min(ring, rows_per_step))
    def _prime(r):
        row_copy(r).start()

    # In-order drain + refill.
    @pl.loop(0, rows_per_step)
    def _drain(r):
        row_copy(r).wait()

        @pl.when(r + ring < rows_per_step)
        def _():
            row_copy(r + ring).start()


def _bigram_logits_hbm(tok, weights, rows_per_step, ring):
    n = tok.shape[0]
    V = weights.shape[0]
    rows_per_step = max(1, min(rows_per_step, _round_up(n, 8)))
    ring = max(1, min(ring, rows_per_step))
    n_pad = _round_up(n, rows_per_step)
    tok = jnp.pad(tok, (0, n_pad - n))
    num_steps = n_pad // rows_per_step

    kernel = functools.partial(_bigram_hbm_gather_kernel,
                               rows_per_step=rows_per_step, ring=ring)
    out = pl.pallas_call(
        kernel,
        out_shape=jax.ShapeDtypeStruct((n_pad, V), weights.dtype),
        grid_spec=pltpu.PrefetchScalarGridSpec(
            num_scalar_prefetch=1,
            grid=(num_steps,),
            in_specs=[pl.BlockSpec(memory_space=pl.ANY)],   # table stays in HBM
            out_specs=pl.BlockSpec(memory_space=pl.ANY),    # gather straight into HBM output
            scratch_shapes=[pltpu.SemaphoreType.DMA((ring,))],
        ),
        compiler_params=pltpu.CompilerParams(
            dimension_semantics=("arbitrary",)),
    )(tok, weights)
    return out[:n]


# ---------------------------------------------------------------------------
# Public wrapper.
# ---------------------------------------------------------------------------
@functools.partial(jax.jit, static_argnames=("tokens_per_step", "rows_per_step",
                                              "ring", "max_resident_vocab",
                                              "force_path"))
def bigram_logits(context, weights, *, tokens_per_step=1024, rows_per_step=16,
                  ring=8, max_resident_vocab=1024, force_path=None):
    """logits = weights[context]  (equivalent to nn.Embedding forward), (B, T, V)."""
    B, T = context.shape
    V = weights.shape[0]

    tok = context.reshape(B * T).astype(jnp.int32)
    # nn.Embedding would raise on OOB ids; clamp so an OOB id can never become an
    # out-of-bounds gather / DMA (documented semantic difference).
    tok = jnp.clip(tok, 0, V - 1)

    use_vmem = V <= max_resident_vocab
    if force_path == "vmem_onehot":
        use_vmem = True
    elif force_path == "hbm_gather":
        use_vmem = False

    if use_vmem:
        out = _bigram_logits_vmem(tok, weights, tokens_per_step)
    else:
        out = _bigram_logits_hbm(tok, weights, rows_per_step, ring)
    return out.reshape(B, T, V)


class BigramLanguageModel:
    """JAX/Pallas port of the PyTorch BigramLanguageModel."""

    def __init__(self, vocab_size, key):
        # nn.Embedding default init: N(0, 1).  (A bf16 table would halve HBM traffic
        # on all generations, but is numerics-affecting, so f32 matches the spec.)
        self.vocab_size = vocab_size
        self.weights = jax.random.normal(key, (vocab_size, vocab_size),
                                         dtype=jnp.float32)

    def forward(self, context, T=None):
        # The reference forward body is a stub (`pass`); the defining compute of a
        # bigram LM is the embedding lookup producing (B, T, vocab) logits.
        logits = bigram_logits(context, self.weights)
        # TODO(synk): reference forward returns nothing (body is `pass`) and defines
        # no loss / T_predict semantics; only the embedding-lookup logits are computed.
        return logits

    def generate(self, context, max_new_tokens):
        # TODO(synk): reference generate loop body is `pass` (no sampling defined);
        # it returns context unchanged, so we do the same.
        return context


if __name__ == "__main__":
    key = jax.random.PRNGKey(0)
    k_w, k_ctx = jax.random.split(key)

    vocab_size = 128
    B, T = 2, 8

    model = BigramLanguageModel(vocab_size, k_w)
    context = jax.random.randint(k_ctx, (B, T), 0, vocab_size, dtype=jnp.int32)

    ref = model.weights[context]          # plain-JAX embedding lookup reference

    # Default path for small vocab: VMEM-resident table + one-hot MXU gather.
    logits = jax.block_until_ready(model.forward(context))
    assert logits.shape == (B, T, vocab_size)
    assert jnp.allclose(logits, ref, atol=1e-4), "vmem path mismatch vs reference"

    # Large-vocab path (HBM->HBM DMA row-gather ring), forced at small shapes so
    # it is validated too; row copies are bit-exact.
    logits_hbm = jax.block_until_ready(
        bigram_logits(context, model.weights, force_path="hbm_gather"))
    assert jnp.array_equal(logits_hbm, ref), "hbm gather path mismatch vs reference"

    # generate() is a no-op loop in the reference module.
    out_ctx = model.generate(context, max_new_tokens=4)
    assert out_ctx.shape == (B, T)

    print("KERNEL_OK")
</pallas_src>

<mosaic_0001>
module attributes {stable_mosaic.version = 11 : i64} {
  func.func @_bigram_vmem_kernel(%arg0: i32, %arg1: memref<16x1xi32, #tpu.memory_space<vmem>>, %arg2: memref<128x128xf32, #tpu.memory_space<vmem>>, %arg3: memref<16x128xf32, #tpu.memory_space<vmem>>) attributes {dimension_semantics = [#tpu.dimension_semantics<parallel>], iteration_bounds = array<i64: 1>, scalar_prefetch = 0 : i64, scratch_operands = 0 : i64, tpu.core_type = #tpu.core_type<tc>, window_params = [{transform_indices = @transform_0, window_bounds = array<i64: 16, 1>}, {pipeline_mode = #tpu.pipeline_mode<synchronous>, transform_indices = @transform_1, window_bounds = array<i64: 128, 128>}, {transform_indices = @transform_2, window_bounds = array<i64: 16, 128>}]} {
    %c0 = arith.constant 0 : index
    %c0_0 = arith.constant 0 : index
    %0 = vector.load %arg1[%c0, %c0_0] : memref<16x1xi32, #tpu.memory_space<vmem>>, vector<16x1xi32>
    %1 = tpu.iota {dimensions = array<i32: 1>} : vector<16x128xi32>
    %2 = vector.broadcast %0 : vector<16x1xi32> to vector<16x128xi32>
    %3 = arith.cmpi eq, %1, %2 : vector<16x128xi32>
    %c0_1 = arith.constant 0 : index
    %c0_2 = arith.constant 0 : index
    %4 = vector.load %arg2[%c0_1, %c0_2] : memref<128x128xf32, #tpu.memory_space<vmem>>, vector<128x128xf32>
    %5 = arith.extui %3 : vector<16x128xi1> to vector<16x128xi32>
    %6 = arith.sitofp %5 : vector<16x128xi32> to vector<16x128xf32>
    %7 = arith.truncf %4 : vector<128x128xf32> to vector<128x128xbf16>
    %8 = arith.extf %7 : vector<128x128xbf16> to vector<128x128xf32>
    %9 = arith.subf %4, %8 : vector<128x128xf32>
    %cst = arith.constant dense<0.000000e+00> : vector<16x128xf32>
    %10 = tpu.matmul %6, %8, %cst {dimension_numbers = #tpu.dot_dimension_numbers<[1], [0], [0], [1], [0, 0, 1, 1], [], []>} : vector<16x128xf32>, vector<128x128xf32>, vector<16x128xf32> -> vector<16x128xf32>
    %cst_3 = arith.constant dense<0.000000e+00> : vector<16x128xf32>
    %11 = tpu.matmul %6, %9, %cst_3 {dimension_numbers = #tpu.dot_dimension_numbers<[1], [0], [0], [1], [0, 0, 1, 1], [], []>} : vector<16x128xf32>, vector<128x128xf32>, vector<16x128xf32> -> vector<16x128xf32>
    %12 = arith.addf %10, %11 : vector<16x128xf32>
    %c0_4 = arith.constant 0 : index
    %c0_5 = arith.constant 0 : index
    %13 = vector.load %arg3[%c0_4, %c0_5] : memref<16x128xf32, #tpu.memory_space<vmem>>, vector<16x128xf32>
    tpu.vector_store %arg3[%c0_4, %c0_5], %12 {strides = array<i32>} : memref<16x128xf32, #tpu.memory_space<vmem>>, vector<16x128xf32>,
    return
  }
  func.func @transform_0(%arg0: i32) -> (i32, i32) {
    %c0_i32 = arith.constant 0 : i32
    %c0_i32_0 = arith.constant 0 : i32
    return %arg0, %c0_i32 : i32, i32
  }
  func.func @transform_1(%arg0: i32) -> (i32, i32) {
    %c0_i32 = arith.constant 0 : i32
    %c0_i32_0 = arith.constant 0 : i32
    %c0_i32_1 = arith.constant 0 : i32
    return %c0_i32, %c0_i32_0 : i32, i32
  }
  func.func @transform_2(%arg0: i32) -> (i32, i32) {
    %c0_i32 = arith.constant 0 : i32
    %c0_i32_0 = arith.constant 0 : i32
    return %arg0, %c0_i32 : i32, i32
  }
}

</mosaic_0001>

<llo_original>
// kernel: bigram_logits.1
$region0: #{bigram_logits.1}
  #allocation0 [shape = 'u32[]', space=smem, size = 0x4, offset = 0x4, fixed_abs, tag = 'smem constant byte address 0x4 - core index']
  #allocation1 [shape = 'u32[144,128]{1,0:T(1,128)}', space=vmem, size = 0x12000, scoped, tag = 'internal scratch']
  %s0 = inlined_call_operand.vmem [shape: s32[16,1], index: 0, kind: input, shape index: {}]
  %s1 = inlined_call_operand.hbm [shape: f32[128,128], index: 1, kind: input, shape index: {}]
  %s2 = inlined_call_operand.hbm [shape: f32[16,128], index: 2, kind: output, shape index: {}]
  %s3 = sld [smem:[#allocation0]]
  $region22: #{bigram_logits.1} parent=0
    _
  %s5 = ssub.s32 1, %s3
  %s6 = scalar_select 0, %s5, %s3
  $region1: #{bigram_logits.1} parent=0
    #allocation2 [shape = 'u8[65536]{0}', space=vmem, size = 0x10000, scoped, tag = 'input window, operand 1, single buffered']
    #allocation3 [shape = 's32[1]{0}', space=sflag, size = 0x4, scoped, tag = 'scoped memory for bigram_logits.1']
    #allocation4 [shape = 's32[1]{0}', space=sflag, size = 0x4, scoped, tag = 'scoped memory for bigram_logits.1']
    #allocation5 [shape = 'u8[8192]{0}', space=vmem, size = 0x2000, scoped, tag = 'output window, operand 0, single buffered']
    %7 = vsyncpa [#allocation3], 0
    %8 = vsyncpa [#allocation4], 0
    // Predicated region
    $region2: #{bigram_logits.1} parent=1 // pred_check
      _
    $region3: #{bigram_logits.1} parent=1 // pred_check_branch
      %10 = sbr.rel (0) target = $region5
    $region4: #{bigram_logits.1} parent=1 // pred_region
      _
    $region5: #{bigram_logits.1} parent=1 // pred_fallthru
      _
    // Predicated region
    $region6: #{bigram_logits.1} parent=1 // pred_check
      _
    $region7: #{bigram_logits.1} parent=1 // pred_check_branch
      %12 = sbr.rel (0) target = $region9
    $region8: #{bigram_logits.1} parent=1 // pred_region
      %s14 = ssub.s32 2048, 2048
      %15 = vsyncadd [#allocation3], %s14
      %s16 = sshll.u32 [#allocation2], 4
      %s17 = int_to_ptr.vmem [resolvable:$true] %s16
      %22 = dma.hbm_to_vmem [thread:$0]  %s1, 2048, %s17, [#allocation3], 128, 128, 8
    $region9: #{bigram_logits.1} parent=1 // pred_fallthru
      _
    // Predicated region
    $region10: #{bigram_logits.1} parent=1 // pred_check
      _
    $region11: #{bigram_logits.1} parent=1 // pred_check_branch
      %24 = sbr.rel (0) target = $region13
    $region12: #{bigram_logits.1} parent=1 // pred_region
      %25 = dma.done [#allocation3], 2048
    $region13: #{bigram_logits.1} parent=1 // pred_fallthru
      _
    %v26 = vld [vmem:[%s0] sm:$0xff]
    %v27 = vld [vmem:[%s0 + $0x8] sm:$0xff]
    %v28 = vlaneseq
    %v29 = vand.u32 %v28, 127
    %30 = vset.pattern.permute.xlu0 0
    %31 = vperm.xlu0 %30, %v26
    %v32 = vpop.permute.xlu0 %31
    %33 = vset.pattern.permute.xlu0 0
    %34 = vperm.xlu0 %33, %v27
    %v35 = vpop.permute.xlu0 %34
    %vm36 = vcmp.eq.s32.totalorder %v29, %v32
    %vm37 = vcmp.eq.s32.totalorder %v29, %v35
    %v38 = vld [vmem:[#allocation2] sm:$0xff]
    %v39 = vld [vmem:[#allocation2 + $0x8] sm:$0xff]
    %v40 = vld [vmem:[#allocation2 + $0x10] sm:$0xff]
    %v41 = vld [vmem:[#allocation2 + $0x18] sm:$0xff]
    %v42 = vld [vmem:[#allocation2 + $0x20] sm:$0xff]
    %v43 = vld [vmem:[#allocation2 + $0x28] sm:$0xff]
    %v44 = vld [vmem:[#allocation2 + $0x30] sm:$0xff]
    %v45 = vld [vmem:[#allocation2 + $0x38] sm:$0xff]
    %v46 = vld [vmem:[#allocation2 + $0x40] sm:$0xff]
    %v47 = vld [vmem:[#allocation2 + $0x48] sm:$0xff]
    %v48 = vld [vmem:[#allocation2 + $0x50] sm:$0xff]
    %v49 = vld [vmem:[#allocation2 + $0x58] sm:$0xff]
    %v50 = vld [vmem:[#allocation2 + $0x60] sm:$0xff]
    %v51 = vld [vmem:[#allocation2 + $0x68] sm:$0xff]
    %v52 = vld [vmem:[#allocation2 + $0x70] sm:$0xff]
    %v53 = vld [vmem:[#allocation2 + $0x78] sm:$0xff]
    %v54 = vsel %vm36, 1, 0
    %v55 = vsel %vm37, 1, 0
    %v56 = vcvt.s32.f32 %v54
    %v57 = vcvt.s32.f32 %v55
    %v58 = vpack.c.bf16 %v39, %v38
    %v59 = vpack.c.bf16 %v41, %v40
    %v60 = vpack.c.bf16 %v43, %v42
    %v61 = vpack.c.bf16 %v45, %v44
    %v62 = vpack.c.bf16 %v47, %v46
    %v63 = vpack.c.bf16 %v49, %v48
    %v64 = vpack.c.bf16 %v51, %v50
    %v65 = vpack.c.bf16 %v53, %v52
    %v66 = vunpack.c.l.bf16 %v58
    %v67 = vunpack.c.h.bf16 %v58
    %v68 = vunpack.c.l.bf16 %v59
    %v69 = vunpack.c.h.bf16 %v59
    %v70 = vunpack.c.l.bf16 %v60
    %v71 = vunpack.c.h.bf16 %v60
    %v72 = vunpack.c.l.bf16 %v61
    %v73 = vunpack.c.h.bf16 %v61
    %v74 = vunpack.c.l.bf16 %v62
    %v75 = vunpack.c.h.bf16 %v62
    %v76 = vunpack.c.l.bf16 %v63
    %v77 = vunpack.c.h.bf16 %v63
    %v78 = vunpack.c.l.bf16 %v64
    %v79 = vunpack.c.h.bf16 %v64
    %v80 = vunpack.c.l.bf16 %v65
    %v81 = vunpack.c.h.bf16 %v65
    %v82 = vsub.f32 %v38, %v66
    %v83 = vsub.f32 %v39, %v67
    %v84 = vsub.f32 %v40, %v68
    %v85 = vsub.f32 %v41, %v69
    %v86 = vsub.f32 %v42, %v70
    %v87 = vsub.f32 %v43, %v71
    %v88 = vsub.f32 %v44, %v72
    %v89 = vsub.f32 %v45, %v73
    %v90 = vsub.f32 %v46, %v74
    %v91 = vsub.f32 %v47, %v75
    %v92 = vsub.f32 %v48, %v76
    %v93 = vsub.f32 %v49, %v77
    %v94 = vsub.f32 %v50, %v78
    %v95 = vsub.f32 %v51, %v79
    %v96 = vsub.f32 %v52, %v80
    %v97 = vsub.f32 %v53, %v81
    %98 = vmatprep.subr.mxu0 0.0
    %99 = vmatpush1.msra.mxu0 %v82
    %100 = vmatprep.subr.mxu0 0.0
    %101 = vmatpush1.msra.mxu0 %v83
    %102 = vmatprep.subr.mxu0 0.0
    %103 = vmatpush1.msra.mxu0 %v84
    %104 = vmatprep.subr.mxu0 0.0
    %105 = vmatpush1.msra.mxu0 %v85
    %106 = vmatprep.subr.mxu0 0.0
    %107 = vmatpush1.msra.mxu0 %v86
    %108 = vmatprep.subr.mxu0 0.0
    %109 = vmatpush1.msra.mxu0 %v87
    %110 = vmatprep.subr.mxu0 0.0
    %111 = vmatpush1.msra.mxu0 %v88
    %112 = vmatprep.subr.mxu0 0.0
    %113 = vmatpush1.msra.mxu0 %v89
    %114 = vmatprep.subr.mxu0 0.0
    %115 = vmatpush1.msra.mxu0 %v90
    %116 = vmatprep.subr.mxu0 0.0
    %117 = vmatpush1.msra.mxu0 %v91
    %118 = vmatprep.subr.mxu0 0.0
    %119 = vmatpush1.msra.mxu0 %v92
    %120 = vmatprep.subr.mxu0 0.0
    %121 = vmatpush1.msra.mxu0 %v93
    %122 = vmatprep.subr.mxu0 0.0
    %123 = vmatpush1.msra.mxu0 %v94
    %124 = vmatprep.subr.mxu0 0.0
    %125 = vmatpush1.msra.mxu0 %v95
    %126 = vmatprep.subr.mxu0 0.0
    %127 = vmatpush1.msra.mxu0 %v96
    %128 = vmatprep.subr.mxu0 0.0
    %129 = vmatpush1.msra.mxu0 %v97
    %130 = vmatprep.subr.mxu0 0.0
    %131 = vmatpush1.msra.mxu0 0.0
    %132 = vmatprep.subr.mxu0 0.0
    %133 = vmatpush1.msra.mxu0 0.0
    %134 = vmatprep.subr.mxu0 0.0
    %135 = vmatpush1.msra.mxu0 0.0
    %136 = vmatprep.subr.mxu0 0.0
    %137 = vmatpush1.msra.mxu0 0.0
    %138 = vmatprep.subr.mxu0 0.0
    %139 = vmatpush1.msra.mxu0 0.0
    %140 = vmatprep.subr.mxu0 0.0
    %141 = vmatpush1.msra.mxu0 0.0
    %142 = vmatprep.subr.mxu0 0.0
    %143 = vmatpush1.msra.mxu0 0.0
    %144 = vmatprep.subr.mxu0 0.0
    %145 = vmatpush1.msra.mxu0 0.0
    %146 = vmatprep.subr.mxu0 0.0
    %147 = vmatpush1.msra.mxu0 0.0
    %148 = vmatprep.subr.mxu0 0.0
    %149 = vmatpush1.msra.mxu0 0.0
    %150 = vmatprep.subr.mxu0 0.0
    %151 = vmatpush1.msra.mxu0 0.0
    %152 = vmatprep.subr.mxu0 0.0
    %153 = vmatpush1.msra.mxu0 0.0
    %154 = vmatprep.subr.mxu0 0.0
    %155 = vmatpush1.msra.mxu0 0.0
    %156 = vmatprep.subr.mxu0 0.0
    %157 = vmatpush1.msra.mxu0 0.0
    %158 = vmatprep.subr.mxu0 0.0
    %159 = vmatpush1.msra.mxu0 0.0
    %160 = vmatprep.subr.mxu0 0.0
    %161 = vmatpush1.msra.mxu0 0.0
    %162 = vmatprep.mubr.f32.mxu0 0.0
    %163 = vmatmul.mubr.f32.gmra.mrb[0].mxu0 %v56
    %v164 = vpop.f32.mrb[0].mxu0
    %v165 = vadd.f32 0.0, %v164
    %v166 = vpop.f32.mrb[0].mxu0
    %167 = vmatprep.mubr.f32.mxu0 0.0
    %168 = vmatmul.mubr.f32.gmra.mrb[0].mxu0 %v57
    %v169 = vpop.f32.mrb[0].mxu0
    %v170 = vadd.f32 0.0, %v169
    %v171 = vpop.f32.mrb[0].mxu0
    %172 = vdwg.mxu0
    %173 = vmatprep.subr.mxu0 0.0
    %174 = vmatpush1.msra.mxu0 %v66
    %175 = vmatprep.subr.mxu0 0.0
    %176 = vmatpush1.msra.mxu0 %v67
    %177 = vmatprep.subr.mxu0 0.0
    %178 = vmatpush1.msra.mxu0 %v68
    %179 = vmatprep.subr.mxu0 0.0
    %180 = vmatpush1.msra.mxu0 %v69
    %181 = vmatprep.subr.mxu0 0.0
    %182 = vmatpush1.msra.mxu0 %v70
    %183 = vmatprep.subr.mxu0 0.0
    %184 = vmatpush1.msra.mxu0 %v71
    %185 = vmatprep.subr.mxu0 0.0
    %186 = vmatpush1.msra.mxu0 %v72
    %187 = vmatprep.subr.mxu0 0.0
    %188 = vmatpush1.msra.mxu0 %v73
    %189 = vmatprep.subr.mxu0 0.0
    %190 = vmatpush1.msra.mxu0 %v74
    %191 = vmatprep.subr.mxu0 0.0
    %192 = vmatpush1.msra.mxu0 %v75
    %193 = vmatprep.subr.mxu0 0.0
    %194 = vmatpush1.msra.mxu0 %v76
    %195 = vmatprep.subr.mxu0 0.0
    %196 = vmatpush1.msra.mxu0 %v77
    %197 = vmatprep.subr.mxu0 0.0
    %198 = vmatpush1.msra.mxu0 %v78
    %199 = vmatprep.subr.mxu0 0.0
    %200 = vmatpush1.msra.mxu0 %v79
    %201 = vmatprep.subr.mxu0 0.0
    %202 = vmatpush1.msra.mxu0 %v80
    %203 = vmatprep.subr.mxu0 0.0
    %204 = vmatpush1.msra.mxu0 %v81
    %205 = vmatprep.subr.mxu0 0.0
    %206 = vmatpush1.msra.mxu0 0.0
    %207 = vmatprep.subr.mxu0 0.0
    %208 = vmatpush1.msra.mxu0 0.0
    %209 = vmatprep.subr.mxu0 0.0
    %210 = vmatpush1.msra.mxu0 0.0
    %211 = vmatprep.subr.mxu0 0.0
    %212 = vmatpush1.msra.mxu0 0.0
    %213 = vmatprep.subr.mxu0 0.0
    %214 = vmatpush1.msra.mxu0 0.0
    %215 = vmatprep.subr.mxu0 0.0
    %216 = vmatpush1.msra.mxu0 0.0
    %217 = vmatprep.subr.mxu0 0.0
    %218 = vmatpush1.msra.mxu0 0.0
    %219 = vmatprep.subr.mxu0 0.0
    %220 = vmatpush1.msra.mxu0 0.0
    %221 = vmatprep.subr.mxu0 0.0
    %222 = vmatpush1.msra.mxu0 0.0
    %223 = vmatprep.subr.mxu0 0.0
    %224 = vmatpush1.msra.mxu0 0.0
    %225 = vmatprep.subr.mxu0 0.0
    %226 = vmatpush1.msra.mxu0 0.0
    %227 = vmatprep.subr.mxu0 0.0
    %228 = vmatpush1.msra.mxu0 0.0
    %229 = vmatprep.subr.mxu0 0.0
    %230 = vmatpush1.msra.mxu0 0.0
    %231 = vmatprep.subr.mxu0 0.0
    %232 = vmatpush1.msra.mxu0 0.0
    %233 = vmatprep.subr.mxu0 0.0
    %234 = vmatpush1.msra.mxu0 0.0
    %235 = vmatprep.subr.mxu0 0.0
    %236 = vmatpush1.msra.mxu0 0.0
    %237 = vmatprep.mubr.f32.mxu0 0.0
    %238 = vmatmul.mubr.f32.gmra.mrb[0].mxu0 %v56
    %v239 = vpop.f32.mrb[0].mxu0
    %v240 = vadd.f32 %v165, %v239
    %v241 = vpop.f32.mrb[0].mxu0
    %242 = vmatprep.mubr.f32.mxu0 0.0
    %243 = vmatmul.mubr.f32.gmra.mrb[0].mxu0 %v57
    %v244 = vpop.f32.mrb[0].mxu0
    %v245 = vadd.f32 %v170, %v244
    %v246 = vpop.f32.mrb[0].mxu0
    %247 = vdwg.mxu0
    %248 = vst [vmem:[#allocation5] sm:$0xff] %v240
    %249 = vst [vmem:[#allocation5 + $0x8] sm:$0xff] %v245
    // Predicated region
    $region14: #{bigram_logits.1} parent=1 // pred_check
      _
    $region15: #{bigram_logits.1} parent=1 // pred_check_branch
      %251 = sbr.rel (0) target = $region17
    $region16: #{bigram_logits.1} parent=1 // pred_region
      %s253 = ssub.s32 256, 256
      %254 = vsyncadd [#allocation4], %s253
      %s255 = sshll.u32 [#allocation5], 4
      %s256 = int_to_ptr.vmem [resolvable:$true] %s255
      %261 = dma.vmem_to_hbm [thread:$0]  %s256, 256, %s2, [#allocation4], 128, 128, 8
    $region17: #{bigram_logits.1} parent=1 // pred_fallthru
      _
    // Predicated region
    $region18: #{bigram_logits.1} parent=1 // pred_check
      _
    $region19: #{bigram_logits.1} parent=1 // pred_check_branch
      %263 = sbr.rel (0) target = $region21
    $region20: #{bigram_logits.1} parent=1 // pred_region
      %264 = dma.done [#allocation4], 256
    $region21: #{bigram_logits.1} parent=1 // pred_fallthru
      _
    %265 = vsyncpa [#allocation3], 1
    %266 = vsyncpa [#allocation4], 1

</llo_original>
